<compile_context>
chip_gen: v7x
topology: tpu7x:2x2x1
jax: 0.10.0
libtpu: 0.0.40
codegen_flags: <defaults>
</compile_context>

<pallas_src>
import functools

import jax
import jax.numpy as jnp
from jax.experimental import pallas as pl
from jax.experimental.pallas import tpu as pltpu


def _round_up(x, m):
    return (x + m - 1) // m * m


def _silu(x):
    # sigmoid(x) = 0.5 * (1 + tanh(x / 2))  -> exact, one EUP transcendental.
    return x * (0.5 * (1.0 + jnp.tanh(0.5 * x)))


def _choose_batch_tiling(B):
    """Return (TB, Bp): batch tile and padded batch extent (TB divides Bp)."""
    if B <= 8:
        return B, B                       # single step, zero padding
    B8 = _round_up(B, 8)
    TB = min(256, B8)                     # amortize per-grid-step overhead
    if B8 // TB < 2:                      # >= 2 steps so v7x can use both TCs
        TB = max(8, _round_up(B8 // 2, 8))
    Bp = _round_up(B8, TB)
    return TB, Bp


def dqn_mlp_kernel(x_ref, w_ref, b_ref, o_ref, *, num_layers, din):
    # x_ref: (TB, din)  f32 activation tile (din = state_dim rounded up to 8)
    # w_ref: (L, F, F)  bf16 packed weights, VMEM-resident across the grid
    # b_ref: (L, 1, F)  f32 packed biases,  VMEM-resident across the grid
    # o_ref: (TB, F)    f32 lane-dense output tile
    h = x_ref[...].astype(jnp.bfloat16)
    # First layer contracts only the real input features (sublane slice of W0).
    acc = jnp.dot(h, w_ref[0, :din, :], preferred_element_type=jnp.float32)
    acc = acc + b_ref[0]
    for l in range(1, num_layers):
        h = _silu(acc).astype(jnp.bfloat16)   # SiLU in f32, store bf16 for MXU
        acc = jnp.dot(h, w_ref[l], preferred_element_type=jnp.float32) + b_ref[l]
    o_ref[...] = acc.astype(o_ref.dtype)


def pack_params(params, feat_pad):
    """params: list of (W_T (din,dout) f32, b (1,dout) f32) per layer.
    Returns (w_packed (L,F,F) bf16, b_packed (L,1,F) f32), zero padded."""
    ws, bs = [], []
    for w_t, b in params:
        din, dout = w_t.shape
        wp = jnp.zeros((feat_pad, feat_pad), jnp.bfloat16)
        wp = wp.at[:din, :dout].set(w_t.astype(jnp.bfloat16))
        bp = jnp.zeros((1, feat_pad), jnp.float32).at[:, :dout].set(b.reshape(1, -1))
        ws.append(wp)
        bs.append(bp)
    return jnp.stack(ws), jnp.stack(bs)


@functools.partial(jax.jit, static_argnames=("nb_actions",))
def dqn_forward_pallas(x, w_packed, b_packed, nb_actions):
    """x: (B, state_dim) f32. Returns (B, nb_actions) f32 Q-values."""
    B, state_dim = x.shape
    L, F, _ = w_packed.shape

    din8 = _round_up(state_dim, 8)        # sublane-aligned contraction extent
    TB, Bp = _choose_batch_tiling(B)

    if (Bp, din8) != (B, state_dim):      # minimal pad (batch rows / to 8 lanes only)
        x = jnp.pad(x, ((0, Bp - B), (0, din8 - state_dim)))

    flops = 2 * Bp * L * F * F
    transcendentals = (L - 1) * Bp * F
    bytes_accessed = (4 * Bp * din8       # x (f32)
                      + 2 * L * F * F     # weights (bf16)
                      + 4 * L * F         # biases (f32)
                      + 4 * Bp * F)       # output (f32)

    out_pad = pl.pallas_call(
        functools.partial(dqn_mlp_kernel, num_layers=L, din=din8),
        out_shape=jax.ShapeDtypeStruct((Bp, F), jnp.float32),
        grid=(Bp // TB,),
        in_specs=[
            pl.BlockSpec((TB, din8), lambda i: (i, 0)),      # activations: batch-tiled
            pl.BlockSpec((L, F, F), lambda i: (0, 0, 0)),    # weights: resident
            pl.BlockSpec((L, 1, F), lambda i: (0, 0, 0)),    # biases: resident
        ],
        out_specs=pl.BlockSpec((TB, F), lambda i: (i, 0)),
        compiler_params=pltpu.CompilerParams(
            dimension_semantics=("parallel",)),
        cost_estimate=pl.CostEstimate(
            flops=flops,
            transcendentals=transcendentals,
            bytes_accessed=bytes_accessed),
    )(x, w_packed, b_packed)

    return out_pad[:B, :nb_actions]


def init_params(key, state_dim, hidden_dim, nb_actions):
    """Deterministic PyTorch-default-style init. Weights stored transposed (in,out)."""
    dims = ([(state_dim, hidden_dim)]
            + [(hidden_dim, hidden_dim)] * 4
            + [(hidden_dim, nb_actions)])
    params = []
    for i, (din, dout) in enumerate(dims):
        kw, kb = jax.random.split(jax.random.fold_in(key, i))
        bound = 1.0 / jnp.sqrt(jnp.float32(din))
        w_t = jax.random.uniform(kw, (din, dout), jnp.float32, -bound, bound)
        b = jax.random.uniform(kb, (1, dout), jnp.float32, -bound, bound)
        params.append((w_t, b))
    return params


def reference_forward(x, params):
    h = x
    for w_t, b in params[:-1]:
        h = jax.nn.silu(h @ w_t + b)
    w_t, b = params[-1]
    return h @ w_t + b


if __name__ == "__main__":
    state_dim = 16
    hidden_dim = 32
    nb_actions = 4

    key = jax.random.PRNGKey(0)
    kx, kp = jax.random.split(key)
    params = init_params(kp, state_dim, hidden_dim, nb_actions)

    # Lane-pad all feature dims to a multiple of 128 (>= 128).
    feat_pad = max(128, _round_up(max(state_dim, hidden_dim, nb_actions), 128))
    w_packed, b_packed = pack_params(params, feat_pad)

    # bf16 weight/activation storage -> slightly loose tolerance vs f32 reference.
    for batch in (4, 32):                       # small "act" path + multi-step grid path
        x = jax.random.normal(jax.random.fold_in(kx, batch),
                              (batch, state_dim), jnp.float32)
        out = dqn_forward_pallas(x, w_packed, b_packed, nb_actions)
        out = jax.block_until_ready(out)
        ref = reference_forward(x, params)
        assert out.shape == (batch, nb_actions)
        assert jnp.allclose(out, ref, atol=2e-2, rtol=2e-2), "mismatch vs reference"

    print("KERNEL_OK")
</pallas_src>

<mosaic_0001>
module attributes {stable_mosaic.version = 11 : i64} {
  func.func @dqn_mlp_kernel(%arg0: i32, %arg1: memref<4x16xf32, #tpu.memory_space<vmem>>, %arg2: memref<6x128x128xbf16, #tpu.memory_space<vmem>>, %arg3: memref<6x1x128xf32, #tpu.memory_space<vmem>>, %arg4: memref<4x128xf32, #tpu.memory_space<vmem>>) attributes {dimension_semantics = [#tpu.dimension_semantics<parallel>], iteration_bounds = array<i64: 1>, scalar_prefetch = 0 : i64, scratch_operands = 0 : i64, tpu.core_type = #tpu.core_type<tc>, window_params = [{transform_indices = @transform_0, window_bounds = array<i64: 4, 16>}, {pipeline_mode = #tpu.pipeline_mode<synchronous>, transform_indices = @transform_1, window_bounds = array<i64: 6, 128, 128>}, {pipeline_mode = #tpu.pipeline_mode<synchronous>, transform_indices = @transform_2, window_bounds = array<i64: 6, 1, 128>}, {transform_indices = @transform_3, window_bounds = array<i64: 4, 128>}]} {
    %c0 = arith.constant 0 : index
    %c0_0 = arith.constant 0 : index
    %0 = vector.load %arg1[%c0, %c0_0] : memref<4x16xf32, #tpu.memory_space<vmem>>, vector<4x16xf32>
    %1 = arith.truncf %0 : vector<4x16xf32> to vector<4x16xbf16>
    %c0_1 = arith.constant 0 : index
    %c0_2 = arith.constant 0 : index
    %c0_3 = arith.constant 0 : index
    %2 = vector.load %arg2[%c0_1, %c0_2, %c0_3] : memref<6x128x128xbf16, #tpu.memory_space<vmem>>, vector<1x16x128xbf16>
    %3 = vector.shape_cast %2 : vector<1x16x128xbf16> to vector<16x128xbf16>
    %cst = arith.constant dense<0.000000e+00> : vector<4x128xf32>
    %4 = tpu.matmul %1, %3, %cst {dimension_numbers = #tpu.dot_dimension_numbers<[1], [0], [0], [1], [0, 0, 1, 1], [], []>} : vector<4x16xbf16>, vector<16x128xbf16>, vector<4x128xf32> -> vector<4x128xf32>
    %c0_4 = arith.constant 0 : index
    %c0_5 = arith.constant 0 : index
    %c0_6 = arith.constant 0 : index
    %5 = vector.load %arg3[%c0_4, %c0_5, %c0_6] : memref<6x1x128xf32, #tpu.memory_space<vmem>>, vector<1x1x128xf32>
    %6 = vector.shape_cast %5 : vector<1x1x128xf32> to vector<1x128xf32>
    %7 = vector.broadcast %6 : vector<1x128xf32> to vector<4x128xf32>
    %8 = arith.addf %4, %7 : vector<4x128xf32>
    %cst_7 = arith.constant 5.000000e-01 : f32
    %9 = vector.broadcast %cst_7 : f32 to vector<4x128xf32>
    %10 = arith.mulf %9, %8 : vector<4x128xf32>
    %11 = math.tanh %10 : vector<4x128xf32>
    %cst_8 = arith.constant 1.000000e+00 : f32
    %12 = vector.broadcast %cst_8 : f32 to vector<4x128xf32>
    %13 = arith.addf %12, %11 : vector<4x128xf32>
    %cst_9 = arith.constant 5.000000e-01 : f32
    %14 = vector.broadcast %cst_9 : f32 to vector<4x128xf32>
    %15 = arith.mulf %14, %13 : vector<4x128xf32>
    %16 = arith.mulf %8, %15 : vector<4x128xf32>
    %17 = arith.truncf %16 : vector<4x128xf32> to vector<4x128xbf16>
    %c1 = arith.constant 1 : index
    %c0_10 = arith.constant 0 : index
    %c0_11 = arith.constant 0 : index
    %18 = vector.load %arg2[%c1, %c0_10, %c0_11] : memref<6x128x128xbf16, #tpu.memory_space<vmem>>, vector<1x128x128xbf16>
    %19 = vector.shape_cast %18 : vector<1x128x128xbf16> to vector<128x128xbf16>
    %cst_12 = arith.constant dense<0.000000e+00> : vector<4x128xf32>
    %20 = tpu.matmul %17, %19, %cst_12 {dimension_numbers = #tpu.dot_dimension_numbers<[1], [0], [0], [1], [0, 0, 1, 1], [], []>} : vector<4x128xbf16>, vector<128x128xbf16>, vector<4x128xf32> -> vector<4x128xf32>
    %c1_13 = arith.constant 1 : index
    %c0_14 = arith.constant 0 : index
    %c0_15 = arith.constant 0 : index
    %21 = vector.load %arg3[%c1_13, %c0_14, %c0_15] : memref<6x1x128xf32, #tpu.memory_space<vmem>>, vector<1x1x128xf32>
    %22 = vector.shape_cast %21 : vector<1x1x128xf32> to vector<1x128xf32>
    %23 = vector.broadcast %22 : vector<1x128xf32> to vector<4x128xf32>
    %24 = arith.addf %20, %23 : vector<4x128xf32>
    %cst_16 = arith.constant 5.000000e-01 : f32
    %25 = vector.broadcast %cst_16 : f32 to vector<4x128xf32>
    %26 = arith.mulf %25, %24 : vector<4x128xf32>
    %27 = math.tanh %26 : vector<4x128xf32>
    %cst_17 = arith.constant 1.000000e+00 : f32
    %28 = vector.broadcast %cst_17 : f32 to vector<4x128xf32>
    %29 = arith.addf %28, %27 : vector<4x128xf32>
    %cst_18 = arith.constant 5.000000e-01 : f32
    %30 = vector.broadcast %cst_18 : f32 to vector<4x128xf32>
    %31 = arith.mulf %30, %29 : vector<4x128xf32>
    %32 = arith.mulf %24, %31 : vector<4x128xf32>
    %33 = arith.truncf %32 : vector<4x128xf32> to vector<4x128xbf16>
    %c2 = arith.constant 2 : index
    %c0_19 = arith.constant 0 : index
    %c0_20 = arith.constant 0 : index
    %34 = vector.load %arg2[%c2, %c0_19, %c0_20] : memref<6x128x128xbf16, #tpu.memory_space<vmem>>, vector<1x128x128xbf16>
    %35 = vector.shape_cast %34 : vector<1x128x128xbf16> to vector<128x128xbf16>
    %cst_21 = arith.constant dense<0.000000e+00> : vector<4x128xf32>
    %36 = tpu.matmul %33, %35, %cst_21 {dimension_numbers = #tpu.dot_dimension_numbers<[1], [0], [0], [1], [0, 0, 1, 1], [], []>} : vector<4x128xbf16>, vector<128x128xbf16>, vector<4x128xf32> -> vector<4x128xf32>
    %c2_22 = arith.constant 2 : index
    %c0_23 = arith.constant 0 : index
    %c0_24 = arith.constant 0 : index
    %37 = vector.load %arg3[%c2_22, %c0_23, %c0_24] : memref<6x1x128xf32, #tpu.memory_space<vmem>>, vector<1x1x128xf32>
    %38 = vector.shape_cast %37 : vector<1x1x128xf32> to vector<1x128xf32>
    %39 = vector.broadcast %38 : vector<1x128xf32> to vector<4x128xf32>
    %40 = arith.addf %36, %39 : vector<4x128xf32>
    %cst_25 = arith.constant 5.000000e-01 : f32
    %41 = vector.broadcast %cst_25 : f32 to vector<4x128xf32>
    %42 = arith.mulf %41, %40 : vector<4x128xf32>
    %43 = math.tanh %42 : vector<4x128xf32>
    %cst_26 = arith.constant 1.000000e+00 : f32
    %44 = vector.broadcast %cst_26 : f32 to vector<4x128xf32>
    %45 = arith.addf %44, %43 : vector<4x128xf32>
    %cst_27 = arith.constant 5.000000e-01 : f32
    %46 = vector.broadcast %cst_27 : f32 to vector<4x128xf32>
    %47 = arith.mulf %46, %45 : vector<4x128xf32>
    %48 = arith.mulf %40, %47 : vector<4x128xf32>
    %49 = arith.truncf %48 : vector<4x128xf32> to vector<4x128xbf16>
    %c3 = arith.constant 3 : index
    %c0_28 = arith.constant 0 : index
    %c0_29 = arith.constant 0 : index
    %50 = vector.load %arg2[%c3, %c0_28, %c0_29] : memref<6x128x128xbf16, #tpu.memory_space<vmem>>, vector<1x128x128xbf16>
    %51 = vector.shape_cast %50 : vector<1x128x128xbf16> to vector<128x128xbf16>
    %cst_30 = arith.constant dense<0.000000e+00> : vector<4x128xf32>
    %52 = tpu.matmul %49, %51, %cst_30 {dimension_numbers = #tpu.dot_dimension_numbers<[1], [0], [0], [1], [0, 0, 1, 1], [], []>} : vector<4x128xbf16>, vector<128x128xbf16>, vector<4x128xf32> -> vector<4x128xf32>
    %c3_31 = arith.constant 3 : index
    %c0_32 = arith.constant 0 : index
    %c0_33 = arith.constant 0 : index
    %53 = vector.load %arg3[%c3_31, %c0_32, %c0_33] : memref<6x1x128xf32, #tpu.memory_space<vmem>>, vector<1x1x128xf32>
    %54 = vector.shape_cast %53 : vector<1x1x128xf32> to vector<1x128xf32>
    %55 = vector.broadcast %54 : vector<1x128xf32> to vector<4x128xf32>
    %56 = arith.addf %52, %55 : vector<4x128xf32>
    %cst_34 = arith.constant 5.000000e-01 : f32
    %57 = vector.broadcast %cst_34 : f32 to vector<4x128xf32>
    %58 = arith.mulf %57, %56 : vector<4x128xf32>
    %59 = math.tanh %58 : vector<4x128xf32>
    %cst_35 = arith.constant 1.000000e+00 : f32
    %60 = vector.broadcast %cst_35 : f32 to vector<4x128xf32>
    %61 = arith.addf %60, %59 : vector<4x128xf32>
    %cst_36 = arith.constant 5.000000e-01 : f32
    %62 = vector.broadcast %cst_36 : f32 to vector<4x128xf32>
    %63 = arith.mulf %62, %61 : vector<4x128xf32>
    %64 = arith.mulf %56, %63 : vector<4x128xf32>
    %65 = arith.truncf %64 : vector<4x128xf32> to vector<4x128xbf16>
    %c4 = arith.constant 4 : index
    %c0_37 = arith.constant 0 : index
    %c0_38 = arith.constant 0 : index
    %66 = vector.load %arg2[%c4, %c0_37, %c0_38] : memref<6x128x128xbf16, #tpu.memory_space<vmem>>, vector<1x128x128xbf16>
    %67 = vector.shape_cast %66 : vector<1x128x128xbf16> to vector<128x128xbf16>
    %cst_39 = arith.constant dense<0.000000e+00> : vector<4x128xf32>
    %68 = tpu.matmul %65, %67, %cst_39 {dimension_numbers = #tpu.dot_dimension_numbers<[1], [0], [0], [1], [0, 0, 1, 1], [], []>} : vector<4x128xbf16>, vector<128x128xbf16>, vector<4x128xf32> -> vector<4x128xf32>
    %c4_40 = arith.constant 4 : index
    %c0_41 = arith.constant 0 : index
    %c0_42 = arith.constant 0 : index
    %69 = vector.load %arg3[%c4_40, %c0_41, %c0_42] : memref<6x1x128xf32, #tpu.memory_space<vmem>>, vector<1x1x128xf32>
    %70 = vector.shape_cast %69 : vector<1x1x128xf32> to vector<1x128xf32>
    %71 = vector.broadcast %70 : vector<1x128xf32> to vector<4x128xf32>
    %72 = arith.addf %68, %71 : vector<4x128xf32>
    %cst_43 = arith.constant 5.000000e-01 : f32
    %73 = vector.broadcast %cst_43 : f32 to vector<4x128xf32>
    %74 = arith.mulf %73, %72 : vector<4x128xf32>
    %75 = math.tanh %74 : vector<4x128xf32>
    %cst_44 = arith.constant 1.000000e+00 : f32
    %76 = vector.broadcast %cst_44 : f32 to vector<4x128xf32>
    %77 = arith.addf %76, %75 : vector<4x128xf32>
    %cst_45 = arith.constant 5.000000e-01 : f32
    %78 = vector.broadcast %cst_45 : f32 to vector<4x128xf32>
    %79 = arith.mulf %78, %77 : vector<4x128xf32>
    %80 = arith.mulf %72, %79 : vector<4x128xf32>
    %81 = arith.truncf %80 : vector<4x128xf32> to vector<4x128xbf16>
    %c5 = arith.constant 5 : index
    %c0_46 = arith.constant 0 : index
    %c0_47 = arith.constant 0 : index
    %82 = vector.load %arg2[%c5, %c0_46, %c0_47] : memref<6x128x128xbf16, #tpu.memory_space<vmem>>, vector<1x128x128xbf16>
    %83 = vector.shape_cast %82 : vector<1x128x128xbf16> to vector<128x128xbf16>
    %cst_48 = arith.constant dense<0.000000e+00> : vector<4x128xf32>
    %84 = tpu.matmul %81, %83, %cst_48 {dimension_numbers = #tpu.dot_dimension_numbers<[1], [0], [0], [1], [0, 0, 1, 1], [], []>} : vector<4x128xbf16>, vector<128x128xbf16>, vector<4x128xf32> -> vector<4x128xf32>
    %c5_49 = arith.constant 5 : index
    %c0_50 = arith.constant 0 : index
    %c0_51 = arith.constant 0 : index
    %85 = vector.load %arg3[%c5_49, %c0_50, %c0_51] : memref<6x1x128xf32, #tpu.memory_space<vmem>>, vector<1x1x128xf32>
    %86 = vector.shape_cast %85 : vector<1x1x128xf32> to vector<1x128xf32>
    %87 = vector.broadcast %86 : vector<1x128xf32> to vector<4x128xf32>
    %88 = arith.addf %84, %87 : vector<4x128xf32>
    %c0_52 = arith.constant 0 : index
    %c0_53 = arith.constant 0 : index
    %89 = vector.load %arg4[%c0_52, %c0_53] : memref<4x128xf32, #tpu.memory_space<vmem>>, vector<4x128xf32>
    tpu.vector_store %arg4[%c0_52, %c0_53], %88 {strides = array<i32>} : memref<4x128xf32, #tpu.memory_space<vmem>>, vector<4x128xf32>,
    return
  }
  func.func @transform_0(%arg0: i32) -> (i32, i32) {
    %c0_i32 = arith.constant 0 : i32
    %c0_i32_0 = arith.constant 0 : i32
    return %arg0, %c0_i32 : i32, i32
  }
  func.func @transform_1(%arg0: i32) -> (i32, i32, i32) {
    %c0_i32 = arith.constant 0 : i32
    %c0_i32_0 = arith.constant 0 : i32
    %c0_i32_1 = arith.constant 0 : i32
    %c0_i32_2 = arith.constant 0 : i32
    return %c0_i32, %c0_i32_0, %c0_i32_1 : i32, i32, i32
  }
  func.func @transform_2(%arg0: i32) -> (i32, i32, i32) {
    %c0_i32 = arith.constant 0 : i32
    %c0_i32_0 = arith.constant 0 : i32
    %c0_i32_1 = arith.constant 0 : i32
    %c0_i32_2 = arith.constant 0 : i32
    return %c0_i32, %c0_i32_0, %c0_i32_1 : i32, i32, i32
  }
  func.func @transform_3(%arg0: i32) -> (i32, i32) {
    %c0_i32 = arith.constant 0 : i32
    %c0_i32_0 = arith.constant 0 : i32
    return %arg0, %c0_i32 : i32, i32
  }
}

</mosaic_0001>

<llo_original>
// kernel: dqn_forward_pallas.1
$region0: #{dqn_forward_pallas.1}
  #allocation0 [shape = 'u32[]', space=smem, size = 0x4, offset = 0x4, fixed_abs, tag = 'smem constant byte address 0x4 - core index']
  #allocation1 [shape = 'u32[144,128]{1,0:T(1,128)}', space=vmem, size = 0x12000, scoped, tag = 'internal scratch']
  %s0 = inlined_call_operand.hbm [shape: f32[4,16], index: 0, kind: input, shape index: {}]
  %s1 = inlined_call_operand.hbm [shape: bf16[6,128,128], index: 1, kind: input, shape index: {}]
  %s2 = inlined_call_operand.vmem [shape: f32[6,1,128], index: 2, kind: input, shape index: {}]
  %s3 = inlined_call_operand.hbm [shape: f32[4,128], index: 3, kind: output, shape index: {}]
  %s4 = sld [smem:[#allocation0]]
  $region30: #{dqn_forward_pallas.1} parent=0
    _
  %s6 = ssub.s32 1, %s4
  %s7 = scalar_select 0, %s6, %s4
  $region1: #{dqn_forward_pallas.1} parent=0
    #allocation2 [shape = 'u8[2048]{0}', space=vmem, size = 0x800, scoped, tag = 'input window, operand 0, single buffered']
    #allocation3 [shape = 's32[1]{0}', space=sflag, size = 0x4, scoped, tag = 'scoped memory for dqn_forward_pallas.1']
    #allocation4 [shape = 's32[1]{0}', space=sflag, size = 0x4, scoped, tag = 'scoped memory for dqn_forward_pallas.1']
    #allocation5 [shape = 'u8[196608]{0}', space=vmem, size = 0x30000, scoped, tag = 'input window, operand 1, single buffered']
    #allocation6 [shape = 's32[1]{0}', space=sflag, size = 0x4, scoped, tag = 'scoped memory for dqn_forward_pallas.1']
    #allocation7 [shape = 'u8[2048]{0}', space=vmem, size = 0x800, scoped, tag = 'output window, operand 0, single buffered']
    %8 = vsyncpa [#allocation3], 0
    %9 = vsyncpa [#allocation6], 0
    %10 = vsyncpa [#allocation4], 0
    // Predicated region
    $region2: #{dqn_forward_pallas.1} parent=1 // pred_check
      _
    $region3: #{dqn_forward_pallas.1} parent=1 // pred_check_branch
      %12 = sbr.rel (0) target = $region5
    $region4: #{dqn_forward_pallas.1} parent=1 // pred_region
      %s14 = ssub.s32 64, 64
      %15 = vsyncadd [#allocation3], %s14
      %s17 = sshll.u32 [#allocation2], 4
      %s18 = int_to_ptr.vmem [resolvable:$true] %s17
      %20 = dma.hbm_to_vmem [thread:$0]  %s0, 64, %s18, [#allocation3]
    $region5: #{dqn_forward_pallas.1} parent=1 // pred_fallthru
      _
    // Predicated region
    $region6: #{dqn_forward_pallas.1} parent=1 // pred_check
      _
    $region7: #{dqn_forward_pallas.1} parent=1 // pred_check_branch
      %22 = sbr.rel (0) target = $region9
    $region8: #{dqn_forward_pallas.1} parent=1 // pred_region
      %s24 = ssub.s32 6144, 6144
      %25 = vsyncadd [#allocation6], %s24
      %s26 = sshll.u32 [#allocation5], 4
      %s27 = int_to_ptr.vmem [resolvable:$true] %s26
      %32 = dma.hbm_to_vmem [thread:$0]  %s1, 6144, %s27, [#allocation6], 64, 64, 4
    $region9: #{dqn_forward_pallas.1} parent=1 // pred_fallthru
      _
    // Predicated region
    $region10: #{dqn_forward_pallas.1} parent=1 // pred_check
      _
    $region11: #{dqn_forward_pallas.1} parent=1 // pred_check_branch
      %34 = sbr.rel (0) target = $region13
    $region12: #{dqn_forward_pallas.1} parent=1 // pred_region
      _
    $region13: #{dqn_forward_pallas.1} parent=1 // pred_fallthru
      _
    // Predicated region
    $region14: #{dqn_forward_pallas.1} parent=1 // pred_check
      _
    $region15: #{dqn_forward_pallas.1} parent=1 // pred_check_branch
      %36 = sbr.rel (0) target = $region17
    $region16: #{dqn_forward_pallas.1} parent=1 // pred_region
      %37 = dma.done [#allocation3], 64
    $region17: #{dqn_forward_pallas.1} parent=1 // pred_fallthru
      _
    // Predicated region
    $region18: #{dqn_forward_pallas.1} parent=1 // pred_check
      _
    $region19: #{dqn_forward_pallas.1} parent=1 // pred_check_branch
      %39 = sbr.rel (0) target = $region21
    $region20: #{dqn_forward_pallas.1} parent=1 // pred_region
      %40 = dma.done [#allocation6], 6144
    $region21: #{dqn_forward_pallas.1} parent=1 // pred_fallthru
      _
    %v42 = vld [vmem:[#allocation2] sm:$0xf]
    %v43 = vpack.c.bf16 %v42, %v42
    %v44 = vld [vmem:[#allocation5] sm:$0xf]
    %v45 = vld [vmem:[#allocation5 + $0x4] sm:$0xf]
    %v46 = vld [vmem:[%s2] sm:$0x1]
    %v48 = vlaneseq
    %v49 = vshrl.u32 %v48, 7
    %v50 = vsub.s32 0, %v49
    %v51 = vrot.slane %v46, %v50
    %v55 = vunpack.c.l.b16 %v44
    %v56 = vunpack.c.l.b16 %v45
    %v57 = vpack.c.b16 %v56, %v55
    %vm59 = vcmask 130048
    %v61 = vsel %vm59, %v43, 0
    %63 = vmatprep.subr.bf16.mxu0 0
    %64 = vmatpush1.bf16.msra.mxu0 %v57
    %65 = vmatprep.subr.bf16.mxu0 0
    %66 = vmatpush1.bf16.msra.mxu0 0
    %67 = vmatprep.subr.bf16.mxu0 0
    %68 = vmatpush1.bf16.msra.mxu0 0
    %69 = vmatprep.subr.bf16.mxu0 0
    %70 = vmatpush1.bf16.msra.mxu0 0
    %71 = vmatprep.subr.bf16.mxu0 0
    %72 = vmatpush1.bf16.msra.mxu0 0
    %73 = vmatprep.subr.bf16.mxu0 0
    %74 = vmatpush1.bf16.msra.mxu0 0
    %75 = vmatprep.subr.bf16.mxu0 0
    %76 = vmatpush1.bf16.msra.mxu0 0
    %77 = vmatprep.subr.bf16.mxu0 0
    %78 = vmatpush1.bf16.msra.mxu0 0
    %79 = vmatprep.subr.bf16.mxu0 0
    %80 = vmatpush1.bf16.msra.mxu0 0
    %81 = vmatprep.subr.bf16.mxu0 0
    %82 = vmatpush1.bf16.msra.mxu0 0
    %83 = vmatprep.subr.bf16.mxu0 0
    %84 = vmatpush1.bf16.msra.mxu0 0
    %85 = vmatprep.subr.bf16.mxu0 0
    %86 = vmatpush1.bf16.msra.mxu0 0
    %87 = vmatprep.subr.bf16.mxu0 0
    %88 = vmatpush1.bf16.msra.mxu0 0
    %89 = vmatprep.subr.bf16.mxu0 0
    %90 = vmatpush1.bf16.msra.mxu0 0
    %91 = vmatprep.subr.bf16.mxu0 0
    %92 = vmatpush1.bf16.msra.mxu0 0
    %93 = vmatprep.subr.bf16.mxu0 0
    %94 = vmatpush1.bf16.msra.mxu0 0
    %95 = vmatprep.mubr.bf16.mxu0 0
    %96 = vmatmul.mubr.bf16.gmra.mrb[0].mxu0 %v61
    %v97 = vpop.f32.mrb[0].mxu0
    %v98 = vadd.f32 %v51, %v97
    %v99 = vpop.f32.mrb[0].mxu0
    %v100 = vpop.f32.mrb[0].mxu0
    %v101 = vpop.f32.mrb[0].mxu0
    %102 = vdwg.mxu0
    %v103 = vmul.f32 %v98, 0.5
    %v104 = vtanh.pop %v103
    %v105 = vadd.f32 %v104, 1.0
    %v106 = vmul.f32 %v105, 0.5
    %v107 = vmul.f32 %v98, %v106
    %v108 = vpack.c.bf16 %v107, %v107
    %s109 = scalar_lea.vmem [#allocation5], 64
    %v110 = vld [vmem:[%s109] sm:$0xf]
    %v111 = vld [vmem:[%s109 + $0x4] sm:$0xf]
    %v112 = vld [vmem:[%s109 + $0x8] sm:$0xf]
    %v113 = vld [vmem:[%s109 + $0xc] sm:$0xf]
    %v114 = vld [vmem:[%s109 + $0x10] sm:$0xf]
    %v115 = vld [vmem:[%s109 + $0x14] sm:$0xf]
    %v116 = vld [vmem:[%s109 + $0x18] sm:$0xf]
    %v117 = vld [vmem:[%s109 + $0x1c] sm:$0xf]
    %v118 = vld [vmem:[%s109 + $0x20] sm:$0xf]
    %v119 = vld [vmem:[%s109 + $0x24] sm:$0xf]
    %v120 = vld [vmem:[%s109 + $0x28] sm:$0xf]
    %v121 = vld [vmem:[%s109 + $0x2c] sm:$0xf]
    %v122 = vld [vmem:[%s109 + $0x30] sm:$0xf]
    %v123 = vld [vmem:[%s109 + $0x34] sm:$0xf]
    %v124 = vld [vmem:[%s109 + $0x38] sm:$0xf]
    %v125 = vld [vmem:[%s109 + $0x3c] sm:$0xf]
    %s126 = scalar_lea.vmem %s2, 1
    %v127 = vld [vmem:[%s126] sm:$0x1]
    %v129 = vlaneseq
    %v130 = vshrl.u32 %v129, 7
    %v131 = vsub.s32 0, %v130
    %v132 = vrot.slane %v127, %v131
    %v150 = vunpack.c.l.b16 %v110
    %v151 = vunpack.c.l.b16 %v111
    %v152 = vunpack.c.l.b16 %v112
    %v153 = vunpack.c.l.b16 %v113
    %v154 = vunpack.c.l.b16 %v114
    %v155 = vunpack.c.l.b16 %v115
    %v156 = vunpack.c.l.b16 %v116
    %v157 = vunpack.c.l.b16 %v117
    %v158 = vunpack.c.l.b16 %v118
    %v159 = vunpack.c.l.b16 %v119
    %v160 = vunpack.c.l.b16 %v120
    %v161 = vunpack.c.l.b16 %v121
    %v162 = vunpack.c.l.b16 %v122
    %v163 = vunpack.c.l.b16 %v123
    %v164 = vunpack.c.l.b16 %v124
    %v165 = vunpack.c.l.b16 %v125
    %v166 = vpack.c.b16 %v151, %v150
    %v167 = vpack.c.b16 %v153, %v152
    %v168 = vpack.c.b16 %v155, %v154
    %v169 = vpack.c.b16 %v157, %v156
    %v170 = vpack.c.b16 %v159, %v158
    %v171 = vpack.c.b16 %v161, %v160
    %v172 = vpack.c.b16 %v163, %v162
    %v173 = vpack.c.b16 %v165, %v164
    %182 = vmatprep.subr.bf16.mxu0 0
    %183 = vmatpush1.bf16.msra.mxu0 %v166
    %184 = vmatprep.subr.bf16.mxu0 0
    %185 = vmatpush1.bf16.msra.mxu0 %v167
    %186 = vmatprep.subr.bf16.mxu0 0
    %187 = vmatpush1.bf16.msra.mxu0 %v168
    %188 = vmatprep.subr.bf16.mxu0 0
    %189 = vmatpush1.bf16.msra.mxu0 %v169
    %190 = vmatprep.subr.bf16.mxu0 0
    %191 = vmatpush1.bf16.msra.mxu0 %v170
    %192 = vmatprep.subr.bf16.mxu0 0
    %193 = vmatpush1.bf16.msra.mxu0 %v171
    %194 = vmatprep.subr.bf16.mxu0 0
    %195 = vmatpush1.bf16.msra.mxu0 %v172
    %196 = vmatprep.subr.bf16.mxu0 0
    %197 = vmatpush1.bf16.msra.mxu0 %v173
    %198 = vmatprep.subr.bf16.mxu0 0
    %199 = vmatpush1.bf16.msra.mxu0 0
    %200 = vmatprep.subr.bf16.mxu0 0
    %201 = vmatpush1.bf16.msra.mxu0 0
    %202 = vmatprep.subr.bf16.mxu0 0
    %203 = vmatpush1.bf16.msra.mxu0 0
    %204 = vmatprep.subr.bf16.mxu0 0
    %205 = vmatpush1.bf16.msra.mxu0 0
    %206 = vmatprep.subr.bf16.mxu0 0
    %207 = vmatpush1.bf16.msra.mxu0 0
    %208 = vmatprep.subr.bf16.mxu0 0
    %209 = vmatpush1.bf16.msra.mxu0 0
    %210 = vmatprep.subr.bf16.mxu0 0
    %211 = vmatpush1.bf16.msra.mxu0 0
    %212 = vmatprep.subr.bf16.mxu0 0
    %213 = vmatpush1.bf16.msra.mxu0 0
    %214 = vmatprep.mubr.bf16.mxu0 0
    %215 = vmatmul.mubr.bf16.gmra.mrb[0].mxu0 %v108
    %v216 = vpop.f32.mrb[0].mxu0
    %v217 = vadd.f32 %v132, %v216
    %v218 = vpop.f32.mrb[0].mxu0
    %v219 = vpop.f32.mrb[0].mxu0
    %v220 = vpop.f32.mrb[0].mxu0
    %221 = vdwg.mxu0
    %v222 = vmul.f32 %v217, 0.5
    %v223 = vtanh.pop %v222
    %v224 = vadd.f32 %v223, 1.0
    %v225 = vmul.f32 %v224, 0.5
    %v226 = vmul.f32 %v217, %v225
    %v227 = vpack.c.bf16 %v226, %v226
    %s228 = scalar_lea.vmem [#allocation5], 128
    %v229 = vld [vmem:[%s228] sm:$0xf]
    %v230 = vld [vmem:[%s228 + $0x4] sm:$0xf]
    %v231 = vld [vmem:[%s228 + $0x8] sm:$0xf]
    %v232 = vld [vmem:[%s228 + $0xc] sm:$0xf]
    %v233 = vld [vmem:[%s228 + $0x10] sm:$0xf]
    %v234 = vld [vmem:[%s228 + $0x14] sm:$0xf]
    %v235 = vld [vmem:[%s228 + $0x18] sm:$0xf]
    %v236 = vld [vmem:[%s228 + $0x1c] sm:$0xf]
    %v237 = vld [vmem:[%s228 + $0x20] sm:$0xf]
    %v238 = vld [vmem:[%s228 + $0x24] sm:$0xf]
    %v239 = vld [vmem:[%s228 + $0x28] sm:$0xf]
    %v240 = vld [vmem:[%s228 + $0x2c] sm:$0xf]
    %v241 = vld [vmem:[%s228 + $0x30] sm:$0xf]
    %v242 = vld [vmem:[%s228 + $0x34] sm:$0xf]
    %v243 = vld [vmem:[%s228 + $0x38] sm:$0xf]
    %v244 = vld [vmem:[%s228 + $0x3c] sm:$0xf]
    %s245 = scalar_lea.vmem %s2, 2
    %v246 = vld [vmem:[%s245] sm:$0x1]
    %v248 = vlaneseq
    %v249 = vshrl.u32 %v248, 7
    %v250 = vsub.s32 0, %v249
    %v251 = vrot.slane %v246, %v250
    %v269 = vunpack.c.l.b16 %v229
    %v270 = vunpack.c.l.b16 %v230
    %v271 = vunpack.c.l.b16 %v231
    %v272 = vunpack.c.l.b16 %v232
    %v273 = vunpack.c.l.b16 %v233
    %v274 = vunpack.c.l.b16 %v234
    %v275 = vunpack.c.l.b16 %v235
    %v276 = vunpack.c.l.b16 %v236
    %v277 = vunpack.c.l.b16 %v237
    %v278 = vunpack.c.l.b16 %v238
    %v279 = vunpack.c.l.b16 %v239
    %v280 = vunpack.c.l.b16 %v240
    %v281 = vunpack.c.l.b16 %v241
    %v282 = vunpack.c.l.b16 %v242
    %v283 = vunpack.c.l.b16 %v243
    %v284 = vunpack.c.l.b16 %v244
    %v285 = vpack.c.b16 %v270, %v269
    %v286 = vpack.c.b16 %v272, %v271
    %v287 = vpack.c.b16 %v274, %v273
    %v288 = vpack.c.b16 %v276, %v275
    %v289 = vpack.c.b16 %v278, %v277
    %v290 = vpack.c.b16 %v280, %v279
    %v291 = vpack.c.b16 %v282, %v281
    %v292 = vpack.c.b16 %v284, %v283
    %301 = vmatprep.subr.bf16.mxu0 0
    %302 = vmatpush1.bf16.msra.mxu0 %v285
    %303 = vmatprep.subr.bf16.mxu0 0
    %304 = vmatpush1.bf16.msra.mxu0 %v286
    %305 = vmatprep.subr.bf16.mxu0 0
    %306 = vmatpush1.bf16.msra.mxu0 %v287
    %307 = vmatprep.subr.bf16.mxu0 0
    %308 = vmatpush1.bf16.msra.mxu0 %v288
    %309 = vmatprep.subr.bf16.mxu0 0
    %310 = vmatpush1.bf16.msra.mxu0 %v289
    %311 = vmatprep.subr.bf16.mxu0 0
    %312 = vmatpush1.bf16.msra.mxu0 %v290
    %313 = vmatprep.subr.bf16.mxu0 0
    %314 = vmatpush1.bf16.msra.mxu0 %v291
    %315 = vmatprep.subr.bf16.mxu0 0
    %316 = vmatpush1.bf16.msra.mxu0 %v292
    %317 = vmatprep.subr.bf16.mxu0 0
    %318 = vmatpush1.bf16.msra.mxu0 0
    %319 = vmatprep.subr.bf16.mxu0 0
    %320 = vmatpush1.bf16.msra.mxu0 0
    %321 = vmatprep.subr.bf16.mxu0 0
    %322 = vmatpush1.bf16.msra.mxu0 0
    %323 = vmatprep.subr.bf16.mxu0 0
    %324 = vmatpush1.bf16.msra.mxu0 0
    %325 = vmatprep.subr.bf16.mxu0 0
    %326 = vmatpush1.bf16.msra.mxu0 0
    %327 = vmatprep.subr.bf16.mxu0 0
    %328 = vmatpush1.bf16.msra.mxu0 0
    %329 = vmatprep.subr.bf16.mxu0 0
    %330 = vmatpush1.bf16.msra.mxu0 0
    %331 = vmatprep.subr.bf16.mxu0 0
    %332 = vmatpush1.bf16.msra.mxu0 0
    %333 = vmatprep.mubr.bf16.mxu0 0
    %334 = vmatmul.mubr.bf16.gmra.mrb[0].mxu0 %v227
    %v335 = vpop.f32.mrb[0].mxu0
    %v336 = vadd.f32 %v251, %v335
    %v337 = vpop.f32.mrb[0].mxu0
    %v338 = vpop.f32.mrb[0].mxu0
    %v339 = vpop.f32.mrb[0].mxu0
    %340 = vdwg.mxu0
    %v341 = vmul.f32 %v336, 0.5
    %v342 = vtanh.pop %v341
    %v343 = vadd.f32 %v342, 1.0
    %v344 = vmul.f32 %v343, 0.5
    %v345 = vmul.f32 %v336, %v344
    %v346 = vpack.c.bf16 %v345, %v345
    %s347 = scalar_lea.vmem [#allocation5], 192
    %v348 = vld [vmem:[%s347] sm:$0xf]
    %v349 = vld [vmem:[%s347 + $0x4] sm:$0xf]
    %v350 = vld [vmem:[%s347 + $0x8] sm:$0xf]
    %v351 = vld [vmem:[%s347 + $0xc] sm:$0xf]
    %v352 = vld [vmem:[%s347 + $0x10] sm:$0xf]
    %v353 = vld [vmem:[%s347 + $0x14] sm:$0xf]
    %v354 = vld [vmem:[%s347 + $0x18] sm:$0xf]
    %v355 = vld [vmem:[%s347 + $0x1c] sm:$0xf]
    %v356 = vld [vmem:[%s347 + $0x20] sm:$0xf]
    %v357 = vld [vmem:[%s347 + $0x24] sm:$0xf]
    %v358 = vld [vmem:[%s347 + $0x28] sm:$0xf]
    %v359 = vld [vmem:[%s347 + $0x2c] sm:$0xf]
    %v360 = vld [vmem:[%s347 + $0x30] sm:$0xf]
    %v361 = vld [vmem:[%s347 + $0x34] sm:$0xf]
    %v362 = vld [vmem:[%s347 + $0x38] sm:$0xf]
    %v363 = vld [vmem:[%s347 + $0x3c] sm:$0xf]
    %s364 = scalar_lea.vmem %s2, 3
    %v365 = vld [vmem:[%s364] sm:$0x1]
    %v367 = vlaneseq
    %v368 = vshrl.u32 %v367, 7
    %v369 = vsub.s32 0, %v368
    %v370 = vrot.slane %v365, %v369
    %v388 = vunpack.c.l.b16 %v348
    %v389 = vunpack.c.l.b16 %v349
    %v390 = vunpack.c.l.b16 %v350
    %v391 = vunpack.c.l.b16 %v351
    %v392 = vunpack.c.l.b16 %v352
    %v393 = vunpack.c.l.b16 %v353
    %v394 = vunpack.c.l.b16 %v354
    %v395 = vunpack.c.l.b16 %v355
    %v396 = vunpack.c.l.b16 %v356
    %v397 = vunpack.c.l.b16 %v357
    %v398 = vunpack.c.l.b16 %v358
    %v399 = vunpack.c.l.b16 %v359
    %v400 = vunpack.c.l.b16 %v360
    %v401 = vunpack.c.l.b16 %v361
    %v402 = vunpack.c.l.b16 %v362
    %v403 = vunpack.c.l.b16 %v363
    %v404 = vpack.c.b16 %v389, %v388
    %v405 = vpack.c.b16 %v391, %v390
    %v406 = vpack.c.b16 %v393, %v392
    %v407 = vpack.c.b16 %v395, %v394
    %v408 = vpack.c.b16 %v397, %v396
    %v409 = vpack.c.b16 %v399, %v398
    %v410 = vpack.c.b16 %v401, %v400
    %v411 = vpack.c.b16 %v403, %v402
    %420 = vmatprep.subr.bf16.mxu0 0
    %421 = vmatpush1.bf16.msra.mxu0 %v404
    %422 = vmatprep.subr.bf16.mxu0 0
    %423 = vmatpush1.bf16.msra.mxu0 %v405
    %424 = vmatprep.subr.bf16.mxu0 0
    %425 = vmatpush1.bf16.msra.mxu0 %v406
    %426 = vmatprep.subr.bf16.mxu0 0
    %427 = vmatpush1.bf16.msra.mxu0 %v407
    %428 = vmatprep.subr.bf16.mxu0 0
    %429 = vmatpush1.bf16.msra.mxu0 %v408
    %430 = vmatprep.subr.bf16.mxu0 0
    %431 = vmatpush1.bf16.msra.mxu0 %v409
    %432 = vmatprep.subr.bf16.mxu0 0
    %433 = vmatpush1.bf16.msra.mxu0 %v410
    %434 = vmatprep.subr.bf16.mxu0 0
    %435 = vmatpush1.bf16.msra.mxu0 %v411
    %436 = vmatprep.subr.bf16.mxu0 0
    %437 = vmatpush1.bf16.msra.mxu0 0
    %438 = vmatprep.subr.bf16.mxu0 0
    %439 = vmatpush1.bf16.msra.mxu0 0
    %440 = vmatprep.subr.bf16.mxu0 0
    %441 = vmatpush1.bf16.msra.mxu0 0
    %442 = vmatprep.subr.bf16.mxu0 0
    %443 = vmatpush1.bf16.msra.mxu0 0
    %444 = vmatprep.subr.bf16.mxu0 0
    %445 = vmatpush1.bf16.msra.mxu0 0
    %446 = vmatprep.subr.bf16.mxu0 0
    %447 = vmatpush1.bf16.msra.mxu0 0
    %448 = vmatprep.subr.bf16.mxu0 0
    %449 = vmatpush1.bf16.msra.mxu0 0
    %450 = vmatprep.subr.bf16.mxu0 0
    %451 = vmatpush1.bf16.msra.mxu0 0
    %452 = vmatprep.mubr.bf16.mxu0 0
    %453 = vmatmul.mubr.bf16.gmra.mrb[0].mxu0 %v346
    %v454 = vpop.f32.mrb[0].mxu0
    %v455 = vadd.f32 %v370, %v454
    %v456 = vpop.f32.mrb[0].mxu0
    %v457 = vpop.f32.mrb[0].mxu0
    %v458 = vpop.f32.mrb[0].mxu0
    %459 = vdwg.mxu0
    %v460 = vmul.f32 %v455, 0.5
    %v461 = vtanh.pop %v460
    %v462 = vadd.f32 %v461, 1.0
    %v463 = vmul.f32 %v462, 0.5
    %v464 = vmul.f32 %v455, %v463
    %v465 = vpack.c.bf16 %v464, %v464
    %s466 = scalar_lea.vmem [#allocation5], 256
    %v467 = vld [vmem:[%s466] sm:$0xf]
    %v468 = vld [vmem:[%s466 + $0x4] sm:$0xf]
    %v469 = vld [vmem:[%s466 + $0x8] sm:$0xf]
    %v470 = vld [vmem:[%s466 + $0xc] sm:$0xf]
    %v471 = vld [vmem:[%s466 + $0x10] sm:$0xf]
    %v472 = vld [vmem:[%s466 + $0x14] sm:$0xf]
    %v473 = vld [vmem:[%s466 + $0x18] sm:$0xf]
    %v474 = vld [vmem:[%s466 + $0x1c] sm:$0xf]
    %v475 = vld [vmem:[%s466 + $0x20] sm:$0xf]
    %v476 = vld [vmem:[%s466 + $0x24] sm:$0xf]
    %v477 = vld [vmem:[%s466 + $0x28] sm:$0xf]
    %v478 = vld [vmem:[%s466 + $0x2c] sm:$0xf]
    %v479 = vld [vmem:[%s466 + $0x30] sm:$0xf]
    %v480 = vld [vmem:[%s466 + $0x34] sm:$0xf]
    %v481 = vld [vmem:[%s466 + $0x38] sm:$0xf]
    %v482 = vld [vmem:[%s466 + $0x3c] sm:$0xf]
    %s483 = scalar_lea.vmem %s2, 4
    %v484 = vld [vmem:[%s483] sm:$0x1]
    %v486 = vlaneseq
    %v487 = vshrl.u32 %v486, 7
    %v488 = vsub.s32 0, %v487
    %v489 = vrot.slane %v484, %v488
    %v507 = vunpack.c.l.b16 %v467
    %v508 = vunpack.c.l.b16 %v468
    %v509 = vunpack.c.l.b16 %v469
    %v510 = vunpack.c.l.b16 %v470
    %v511 = vunpack.c.l.b16 %v471
    %v512 = vunpack.c.l.b16 %v472
    %v513 = vunpack.c.l.b16 %v473
    %v514 = vunpack.c.l.b16 %v474
    %v515 = vunpack.c.l.b16 %v475
    %v516 = vunpack.c.l.b16 %v476
    %v517 = vunpack.c.l.b16 %v477
    %v518 = vunpack.c.l.b16 %v478
    %v519 = vunpack.c.l.b16 %v479
    %v520 = vunpack.c.l.b16 %v480
    %v521 = vunpack.c.l.b16 %v481
    %v522 = vunpack.c.l.b16 %v482
    %v523 = vpack.c.b16 %v508, %v507
    %v524 = vpack.c.b16 %v510, %v509
    %v525 = vpack.c.b16 %v512, %v511
    %v526 = vpack.c.b16 %v514, %v513
    %v527 = vpack.c.b16 %v516, %v515
    %v528 = vpack.c.b16 %v518, %v517
    %v529 = vpack.c.b16 %v520, %v519
    %v530 = vpack.c.b16 %v522, %v521
    %539 = vmatprep.subr.bf16.mxu0 0
    %540 = vmatpush1.bf16.msra.mxu0 %v523
    %541 = vmatprep.subr.bf16.mxu0 0
    %542 = vmatpush1.bf16.msra.mxu0 %v524
    %543 = vmatprep.subr.bf16.mxu0 0
    %544 = vmatpush1.bf16.msra.mxu0 %v525
    %545 = vmatprep.subr.bf16.mxu0 0
    %546 = vmatpush1.bf16.msra.mxu0 %v526
    %547 = vmatprep.subr.bf16.mxu0 0
    %548 = vmatpush1.bf16.msra.mxu0 %v527
    %549 = vmatprep.subr.bf16.mxu0 0
    %550 = vmatpush1.bf16.msra.mxu0 %v528
    %551 = vmatprep.subr.bf16.mxu0 0
    %552 = vmatpush1.bf16.msra.mxu0 %v529
    %553 = vmatprep.subr.bf16.mxu0 0
    %554 = vmatpush1.bf16.msra.mxu0 %v530
    %555 = vmatprep.subr.bf16.mxu0 0
    %556 = vmatpush1.bf16.msra.mxu0 0
    %557 = vmatprep.subr.bf16.mxu0 0
    %558 = vmatpush1.bf16.msra.mxu0 0
    %559 = vmatprep.subr.bf16.mxu0 0
    %560 = vmatpush1.bf16.msra.mxu0 0
    %561 = vmatprep.subr.bf16.mxu0 0
    %562 = vmatpush1.bf16.msra.mxu0 0
    %563 = vmatprep.subr.bf16.mxu0 0
    %564 = vmatpush1.bf16.msra.mxu0 0
    %565 = vmatprep.subr.bf16.mxu0 0
    %566 = vmatpush1.bf16.msra.mxu0 0
    %567 = vmatprep.subr.bf16.mxu0 0
    %568 = vmatpush1.bf16.msra.mxu0 0
    %569 = vmatprep.subr.bf16.mxu0 0
    %570 = vmatpush1.bf16.msra.mxu0 0
    %571 = vmatprep.mubr.bf16.mxu0 0
    %572 = vmatmul.mubr.bf16.gmra.mrb[0].mxu0 %v465
    %v573 = vpop.f32.mrb[0].mxu0
    %v574 = vadd.f32 %v489, %v573
    %v575 = vpop.f32.mrb[0].mxu0
    %v576 = vpop.f32.mrb[0].mxu0
    %v577 = vpop.f32.mrb[0].mxu0
    %578 = vdwg.mxu0
    %v579 = vmul.f32 %v574, 0.5
    %v580 = vtanh.pop %v579
    %v581 = vadd.f32 %v580, 1.0
    %v582 = vmul.f32 %v581, 0.5
    %v583 = vmul.f32 %v574, %v582
    %v584 = vpack.c.bf16 %v583, %v583
    %s585 = scalar_lea.vmem [#allocation5], 320
    %v586 = vld [vmem:[%s585] sm:$0xf]
    %v587 = vld [vmem:[%s585 + $0x4] sm:$0xf]
    %v588 = vld [vmem:[%s585 + $0x8] sm:$0xf]
    %v589 = vld [vmem:[%s585 + $0xc] sm:$0xf]
    %v590 = vld [vmem:[%s585 + $0x10] sm:$0xf]
    %v591 = vld [vmem:[%s585 + $0x14] sm:$0xf]
    %v592 = vld [vmem:[%s585 + $0x18] sm:$0xf]
    %v593 = vld [vmem:[%s585 + $0x1c] sm:$0xf]
    %v594 = vld [vmem:[%s585 + $0x20] sm:$0xf]
    %v595 = vld [vmem:[%s585 + $0x24] sm:$0xf]
    %v596 = vld [vmem:[%s585 + $0x28] sm:$0xf]
    %v597 = vld [vmem:[%s585 + $0x2c] sm:$0xf]
    %v598 = vld [vmem:[%s585 + $0x30] sm:$0xf]
    %v599 = vld [vmem:[%s585 + $0x34] sm:$0xf]
    %v600 = vld [vmem:[%s585 + $0x38] sm:$0xf]
    %v601 = vld [vmem:[%s585 + $0x3c] sm:$0xf]
    %s602 = scalar_lea.vmem %s2, 5
    %v603 = vld [vmem:[%s602] sm:$0x1]
    %v605 = vlaneseq
    %v606 = vshrl.u32 %v605, 7
    %v607 = vsub.s32 0, %v606
    %v608 = vrot.slane %v603, %v607
    %v626 = vunpack.c.l.b16 %v586
    %v627 = vunpack.c.l.b16 %v587
    %v628 = vunpack.c.l.b16 %v588
    %v629 = vunpack.c.l.b16 %v589
    %v630 = vunpack.c.l.b16 %v590
    %v631 = vunpack.c.l.b16 %v591
    %v632 = vunpack.c.l.b16 %v592
    %v633 = vunpack.c.l.b16 %v593
    %v634 = vunpack.c.l.b16 %v594
    %v635 = vunpack.c.l.b16 %v595
    %v636 = vunpack.c.l.b16 %v596
    %v637 = vunpack.c.l.b16 %v597
    %v638 = vunpack.c.l.b16 %v598
    %v639 = vunpack.c.l.b16 %v599
    %v640 = vunpack.c.l.b16 %v600
    %v641 = vunpack.c.l.b16 %v601
    %v642 = vpack.c.b16 %v627, %v626
    %v643 = vpack.c.b16 %v629, %v628
    %v644 = vpack.c.b16 %v631, %v630
    %v645 = vpack.c.b16 %v633, %v632
    %v646 = vpack.c.b16 %v635, %v634
    %v647 = vpack.c.b16 %v637, %v636
    %v648 = vpack.c.b16 %v639, %v638
    %v649 = vpack.c.b16 %v641, %v640
    %658 = vmatprep.subr.bf16.mxu0 0
    %659 = vmatpush1.bf16.msra.mxu0 %v642
    %660 = vmatprep.subr.bf16.mxu0 0
    %661 = vmatpush1.bf16.msra.mxu0 %v643
    %662 = vmatprep.subr.bf16.mxu0 0
    %663 = vmatpush1.bf16.msra.mxu0 %v644
    %664 = vmatprep.subr.bf16.mxu0 0
    %665 = vmatpush1.bf16.msra.mxu0 %v645
    %666 = vmatprep.subr.bf16.mxu0 0
    %667 = vmatpush1.bf16.msra.mxu0 %v646
    %668 = vmatprep.subr.bf16.mxu0 0
    %669 = vmatpush1.bf16.msra.mxu0 %v647
    %670 = vmatprep.subr.bf16.mxu0 0
    %671 = vmatpush1.bf16.msra.mxu0 %v648
    %672 = vmatprep.subr.bf16.mxu0 0
    %673 = vmatpush1.bf16.msra.mxu0 %v649
    %674 = vmatprep.subr.bf16.mxu0 0
    %675 = vmatpush1.bf16.msra.mxu0 0
    %676 = vmatprep.subr.bf16.mxu0 0
    %677 = vmatpush1.bf16.msra.mxu0 0
    %678 = vmatprep.subr.bf16.mxu0 0
    %679 = vmatpush1.bf16.msra.mxu0 0
    %680 = vmatprep.subr.bf16.mxu0 0
    %681 = vmatpush1.bf16.msra.mxu0 0
    %682 = vmatprep.subr.bf16.mxu0 0
    %683 = vmatpush1.bf16.msra.mxu0 0
    %684 = vmatprep.subr.bf16.mxu0 0
    %685 = vmatpush1.bf16.msra.mxu0 0
    %686 = vmatprep.subr.bf16.mxu0 0
    %687 = vmatpush1.bf16.msra.mxu0 0
    %688 = vmatprep.subr.bf16.mxu0 0
    %689 = vmatpush1.bf16.msra.mxu0 0
    %690 = vmatprep.mubr.bf16.mxu0 0
    %691 = vmatmul.mubr.bf16.gmra.mrb[0].mxu0 %v584
    %v692 = vpop.f32.mrb[0].mxu0
    %v693 = vadd.f32 %v608, %v692
    %v694 = vpop.f32.mrb[0].mxu0
    %v695 = vpop.f32.mrb[0].mxu0
    %v696 = vpop.f32.mrb[0].mxu0
    %697 = vdwg.mxu0
    %698 = vst [vmem:[#allocation7] sm:$0xf] %v693
    // Predicated region
    $region22: #{dqn_forward_pallas.1} parent=1 // pred_check
      _
    $region23: #{dqn_forward_pallas.1} parent=1 // pred_check_branch
      %700 = sbr.rel (0) target = $region25
    $region24: #{dqn_forward_pallas.1} parent=1 // pred_region
      %s702 = ssub.s32 64, 64
      %703 = vsyncadd [#allocation4], %s702
      %s705 = sshll.u32 [#allocation7], 4
      %s706 = int_to_ptr.vmem [resolvable:$true] %s705
      %708 = dma.vmem_to_hbm [thread:$0]  %s706, 64, %s3, [#allocation4]
    $region25: #{dqn_forward_pallas.1} parent=1 // pred_fallthru
      _
    // Predicated region
    $region26: #{dqn_forward_pallas.1} parent=1 // pred_check
      _
    $region27: #{dqn_forward_pallas.1} parent=1 // pred_check_branch
      %710 = sbr.rel (0) target = $region29
    $region28: #{dqn_forward_pallas.1} parent=1 // pred_region
      %711 = dma.done [#allocation4], 64
    $region29: #{dqn_forward_pallas.1} parent=1 // pred_fallthru
      _
    %712 = vsyncpa [#allocation3], 1
    %713 = vsyncpa [#allocation6], 1
    %714 = vsyncpa [#allocation4], 1

</llo_original>
